<compile_context>
chip_gen: v7x
topology: tpu7x:2x2x1
jax: 0.10.0
libtpu: 0.0.40
codegen_flags: <defaults>
</compile_context>

<pallas_src>
import math

import jax
import jax.numpy as jnp
from jax.experimental import pallas as pl
from jax.experimental.pallas import tpu as pltpu

LANE = 128


def _round_up(x, m):
    return (x + m - 1) // m * m


# --------------------------------------------------------------------------
# Fused Pallas kernel: all IntraAttention layers + mean pooling.
# Grid = (batch, num_layers); the running token state for the current batch
# element is carried across the layer axis in VMEM scratch.
# --------------------------------------------------------------------------
def intra_attention_kernel(len_ref, x_ref, pe_ref, wm_ref, wh_ref, wor_ref,
                           b_ref, tok_ref, seq_ref, xs_ref):
    b = pl.program_id(0)
    layer = pl.program_id(1)
    n = len_ref[b]                                     # valid length (SMEM)

    @pl.when(layer == 0)
    def _():
        xs_ref[...] = x_ref[0]                         # load embeddings once

    x = xs_ref[...]                                    # (L, Ep) f32
    L, Ep = x.shape

    # --- attention scores --------------------------------------------------
    pex = x + pe_ref[...]                              # PE dropout == identity
    pexb = pex.astype(jnp.bfloat16)
    # pex @ pex.T without materializing a transpose (MXU-native contraction).
    score = jax.lax.dot_general(pexb, pexb, (((1,), (1,)), ((), ())),
                                preferred_element_type=jnp.float32)   # (L, L)

    col_ok = jax.lax.broadcasted_iota(jnp.int32, (1, L), 1) < n
    row_ok = jax.lax.broadcasted_iota(jnp.int32, (L, 1), 0) < n
    score = jnp.where(col_ok & row_ok, score, jnp.float32(1e-10))

    # softmax over last dim (masked_fill semantics kept: padded keys still
    # contribute exp(1e-10 - max) to the denominator, as in the reference).
    score = score - jnp.max(score, axis=-1, keepdims=True)
    e = jnp.exp(score)
    attn = e * pl.reciprocal(jnp.sum(e, axis=-1, keepdims=True), approx=True)

    xb = x.astype(jnp.bfloat16)
    message = jnp.dot(attn.astype(jnp.bfloat16), xb,
                      preferred_element_type=jnp.float32)             # (L, Ep)

    # --- ConvGRUCell (kernel_size=1), fused gate matmuls --------------------
    # gm = message @ [Wu_in | Wr_in | Wo_in] + [bu | br | bo]   -> (L, 3Ep)
    # gh = x       @ [Wu_hid | Wr_hid]                          -> (L, 2Ep)
    gm = jnp.dot(message.astype(jnp.bfloat16), wm_ref[...],
                 preferred_element_type=jnp.float32) + b_ref[...]
    gh = jnp.dot(xb, wh_ref[...], preferred_element_type=jnp.float32)

    update = jax.nn.sigmoid(gm[:, :Ep] + gh[:, :Ep])
    reset = jax.nn.sigmoid(gm[:, Ep:2 * Ep] + gh[:, Ep:2 * Ep])
    out_in = jnp.tanh(gm[:, 2 * Ep:]
                      + jnp.dot((x * reset).astype(jnp.bfloat16), wor_ref[...],
                                preferred_element_type=jnp.float32))
    new_x = x * (1.0 - update) + out_in * update
    xs_ref[...] = new_x

    # --- epilogue: token embeddings + fused mean_with_lens pooling ----------
    @pl.when(layer == pl.num_programs(1) - 1)
    def _():
        tok_ref[0] = new_x
        rows = jax.lax.broadcasted_iota(jnp.int32, (L, 1), 0)
        summed = jnp.sum(jnp.where(rows < n, new_x, 0.0), axis=0,
                         keepdims=True)                # (1, Ep)
        seq_ref[0] = summed / n.astype(jnp.float32)


# --------------------------------------------------------------------------
# Wrappers
# --------------------------------------------------------------------------
def build_intra_params(pe, W, bvec):
    """Re-lay out ConvGRU weights for the fused kernel and zero-pad the
    embedding axis to a multiple of 128 lanes.  W is (3, 2E, E) stacked as
    [update, reset, out], each entry being Linear.weight.T."""
    E = pe.shape[-1]
    Ep = _round_up(E, LANE)

    def pad2(a):
        return jnp.pad(a, ((0, Ep - a.shape[0]), (0, Ep - a.shape[1])))

    def pad_bias(v):
        return jnp.pad(v.reshape(1, -1), ((0, 0), (0, Ep - E)))

    Wu, Wr, Wo = W[0], W[1], W[2]
    wm = jnp.concatenate([pad2(Wu[:E]), pad2(Wr[:E]), pad2(Wo[:E])],
                         axis=1).astype(jnp.bfloat16)          # (Ep, 3Ep)
    wh = jnp.concatenate([pad2(Wu[E:]), pad2(Wr[E:])],
                         axis=1).astype(jnp.bfloat16)          # (Ep, 2Ep)
    wor = pad2(Wo[E:]).astype(jnp.bfloat16)                    # (Ep, Ep)
    bias = jnp.concatenate([pad_bias(bvec[0]), pad_bias(bvec[1]),
                            pad_bias(bvec[2])], axis=1)        # (1, 3Ep) f32
    pe_p = jnp.pad(pe, ((0, 0), (0, Ep - E)))                  # (L, Ep) f32
    return pe_p, wm, wh, wor, bias, Ep


def intra_attention_forward(token_ids, lens, emb_table, pe, W, bvec,
                            num_layers):
    x = emb_table[token_ids].astype(jnp.float32)       # embedding lookup glue
    B, L, E = x.shape
    pe_p, wm, wh, wor, bias, Ep = build_intra_params(pe, W, bvec)
    x_p = jnp.pad(x, ((0, 0), (0, 0), (0, Ep - E)))

    grid_spec = pltpu.PrefetchScalarGridSpec(
        num_scalar_prefetch=1,
        grid=(B, num_layers),
        in_specs=[
            pl.BlockSpec((1, L, Ep), lambda b, l, lens: (b, 0, 0)),     # x
            pl.BlockSpec((L, Ep), lambda b, l, lens: (0, 0)),           # pe
            pl.BlockSpec((Ep, 3 * Ep), lambda b, l, lens: (0, 0)),      # Wm
            pl.BlockSpec((Ep, 2 * Ep), lambda b, l, lens: (0, 0)),      # Wh
            pl.BlockSpec((Ep, Ep), lambda b, l, lens: (0, 0)),          # Wor
            pl.BlockSpec((1, 3 * Ep), lambda b, l, lens: (0, 0)),       # bias
        ],
        out_specs=(
            pl.BlockSpec((1, L, Ep), lambda b, l, lens: (b, 0, 0)),     # tokens
            pl.BlockSpec((1, 1, Ep), lambda b, l, lens: (b, 0, 0)),     # pooled
        ),
        scratch_shapes=[pltpu.VMEM((L, Ep), jnp.float32)],
    )
    tok, seq = pl.pallas_call(
        intra_attention_kernel,
        out_shape=(jax.ShapeDtypeStruct((B, L, Ep), jnp.float32),
                   jax.ShapeDtypeStruct((B, 1, Ep), jnp.float32)),
        grid_spec=grid_spec,
        compiler_params=pltpu.CompilerParams(
            dimension_semantics=("parallel", "arbitrary")),
    )(lens, x_p, pe_p, wm, wh, wor, bias)
    return {"token_emb": tok[..., :E], "seq_emb": seq[:, 0, :E]}


# --------------------------------------------------------------------------
# Parameter / input construction (deterministic)
# --------------------------------------------------------------------------
def positional_encoding(max_len, d_model):
    pos = jnp.arange(max_len, dtype=jnp.float32)[:, None]
    div = jnp.exp(jnp.arange(0, d_model, 2, dtype=jnp.float32)
                  * -(math.log(10000.0) / d_model))
    pe = jnp.zeros((max_len, d_model), dtype=jnp.float32)
    pe = pe.at[:, 0::2].set(jnp.sin(pos * div))
    pe = pe.at[:, 1::2].set(jnp.cos(pos * div))
    return pe


def orthogonal_linear_weight_T(key, in_dim, out_dim):
    """Emulates init.orthogonal_ on Linear.weight (out, in); returns W.T."""
    a = jax.random.normal(key, (in_dim, out_dim), dtype=jnp.float32)
    q, r = jnp.linalg.qr(a)
    q = q * jnp.sign(jnp.diagonal(r))[None, :]
    return q


# --------------------------------------------------------------------------
# Pure-JAX reference (mirrors the kernel's MXU numerics: bf16-rounded matmul
# inputs, f32 accumulation — the kernel no longer runs HIGHEST precision).
# --------------------------------------------------------------------------
def reference_forward(x, lens, pe, W, bvec, num_layers):
    B, L, E = x.shape

    def bf(a):
        return a.astype(jnp.bfloat16).astype(jnp.float32)

    for _ in range(num_layers):
        pex = x + pe[None]
        score = jnp.einsum("ble,bke->blk", bf(pex), bf(pex))
        col = jnp.arange(L)[None, None, :] < lens[:, None, None]
        row = jnp.arange(L)[None, :, None] < lens[:, None, None]
        score = jnp.where(col & row, score, 1e-10)
        attn = jax.nn.softmax(score, axis=-1)
        message = jnp.einsum("blk,bke->ble", bf(attn), bf(x))
        stacked = jnp.concatenate([message, x], axis=-1)
        upd = jax.nn.sigmoid(jnp.einsum("bls,se->ble", bf(stacked), bf(W[0]))
                             + bvec[0])
        rst = jax.nn.sigmoid(jnp.einsum("bls,se->ble", bf(stacked), bf(W[1]))
                             + bvec[1])
        stacked2 = jnp.concatenate([message, x * rst], axis=-1)
        out_in = jnp.tanh(jnp.einsum("bls,se->ble", bf(stacked2), bf(W[2]))
                          + bvec[2])
        x = x * (1.0 - upd) + out_in * upd
    valid = jnp.arange(L)[None, :, None] < lens[:, None, None]
    seq = jnp.sum(jnp.where(valid, x, 0.0), axis=1) / \
        lens[:, None].astype(jnp.float32)
    return x, seq


# --------------------------------------------------------------------------
if __name__ == "__main__":
    B, L, E, VOCAB, NUM_LAYERS = 2, 8, 32, 50, 2

    key = jax.random.PRNGKey(0)
    k_emb, k_tok, kw_u, kw_r, kw_o = jax.random.split(key, 5)

    emb_table = jax.random.normal(k_emb, (VOCAB, E), dtype=jnp.float32)
    token_ids = jax.random.randint(k_tok, (B, L), 0, VOCAB)
    lens = jnp.array([L, 5], dtype=jnp.int32)            # text_len

    pe = positional_encoding(L, E)
    W = jnp.stack([
        orthogonal_linear_weight_T(kw_u, 2 * E, E),      # update_gate
        orthogonal_linear_weight_T(kw_r, 2 * E, E),      # reset_gate
        orthogonal_linear_weight_T(kw_o, 2 * E, E),      # out_gate
    ])                                                   # (3, 2E, E)
    bvec = jnp.zeros((3, E), dtype=jnp.float32)          # init.constant_(b, 0)

    out = intra_attention_forward(token_ids, lens, emb_table, pe, W, bvec,
                                  NUM_LAYERS)
    token_emb = jax.block_until_ready(out["token_emb"])
    seq_emb = jax.block_until_ready(out["seq_emb"])

    x0 = emb_table[token_ids].astype(jnp.float32)
    ref_tok, ref_seq = reference_forward(x0, lens, pe, W, bvec, NUM_LAYERS)

    assert token_emb.shape == (B, L, E)
    assert seq_emb.shape == (B, E)
    # Tolerance accounts for single-pass bf16 MXU accumulation order and the
    # approx reciprocal in the softmax (the reference mirrors bf16 rounding).
    assert jnp.allclose(token_emb, ref_tok, atol=1e-2, rtol=1e-2), \
        "token_emb mismatch vs. reference"
    assert jnp.allclose(seq_emb, ref_seq, atol=1e-2, rtol=1e-2), \
        "seq_emb mismatch vs. reference"

    print("KERNEL_OK")
</pallas_src>

<mosaic_0001>
module attributes {stable_mosaic.version = 11 : i64} {
  func.func @intra_attention_kernel(%arg0: i32, %arg1: i32, %arg2: memref<2xi32, #tpu.memory_space<smem>>, %arg3: memref<1x8x128xf32, #tpu.memory_space<vmem>>, %arg4: memref<8x128xf32, #tpu.memory_space<vmem>>, %arg5: memref<128x384xbf16, #tpu.memory_space<vmem>>, %arg6: memref<128x256xbf16, #tpu.memory_space<vmem>>, %arg7: memref<128x128xbf16, #tpu.memory_space<vmem>>, %arg8: memref<1x384xf32, #tpu.memory_space<vmem>>, %arg9: memref<1x8x128xf32, #tpu.memory_space<vmem>>, %arg10: memref<1x1x128xf32, #tpu.memory_space<vmem>>, %arg11: memref<8x128xf32, #tpu.memory_space<vmem>>) attributes {dimension_semantics = [#tpu.dimension_semantics<parallel>, #tpu.dimension_semantics<arbitrary>], iteration_bounds = array<i64: 2, 2>, scalar_prefetch = 1 : i64, scratch_operands = 1 : i64, tpu.core_type = #tpu.core_type<tc>, window_params = [{transform_indices = @transform_0, window_bounds = array<i64: 1, 8, 128>}, {pipeline_mode = #tpu.pipeline_mode<synchronous>, transform_indices = @transform_1, window_bounds = array<i64: 8, 128>}, {pipeline_mode = #tpu.pipeline_mode<synchronous>, transform_indices = @transform_2, window_bounds = array<i64: 128, 384>}, {pipeline_mode = #tpu.pipeline_mode<synchronous>, transform_indices = @transform_3, window_bounds = array<i64: 128, 256>}, {pipeline_mode = #tpu.pipeline_mode<synchronous>, transform_indices = @transform_4, window_bounds = array<i64: 128, 128>}, {pipeline_mode = #tpu.pipeline_mode<synchronous>, transform_indices = @transform_5, window_bounds = array<i64: 1, 384>}, {transform_indices = @transform_6, window_bounds = array<i64: 1, 8, 128>}, {transform_indices = @transform_7, window_bounds = array<i64: 1, 1, 128>}]} {
    %0 = arith.index_cast %arg0 : i32 to index
    %1 = memref.load %arg2[%0] : memref<2xi32, #tpu.memory_space<smem>>
    %c0_i32 = arith.constant 0 : i32
    %2 = arith.cmpi eq, %arg1, %c0_i32 : i32
    %3 = arith.extui %2 : i1 to i32
    %c0_i32_0 = arith.constant 0 : i32
    %4 = arith.cmpi ne, %3, %c0_i32_0 : i32
    scf.if %4 {
      %c0_25 = arith.constant 0 : index
      %c0_26 = arith.constant 0 : index
      %c0_27 = arith.constant 0 : index
      %74 = vector.load %arg3[%c0_25, %c0_26, %c0_27] : memref<1x8x128xf32, #tpu.memory_space<vmem>>, vector<1x8x128xf32>
      %75 = vector.shape_cast %74 : vector<1x8x128xf32> to vector<8x128xf32>
      %c0_28 = arith.constant 0 : index
      %c0_29 = arith.constant 0 : index
      %76 = vector.load %arg11[%c0_28, %c0_29] : memref<8x128xf32, #tpu.memory_space<vmem>>, vector<8x128xf32>
      tpu.vector_store %arg11[%c0_28, %c0_29], %75 {strides = array<i32>} : memref<8x128xf32, #tpu.memory_space<vmem>>, vector<8x128xf32>,
    } else {
    }
    %c0 = arith.constant 0 : index
    %c0_1 = arith.constant 0 : index
    %5 = vector.load %arg11[%c0, %c0_1] : memref<8x128xf32, #tpu.memory_space<vmem>>, vector<8x128xf32>
    %c0_2 = arith.constant 0 : index
    %c0_3 = arith.constant 0 : index
    %6 = vector.load %arg4[%c0_2, %c0_3] : memref<8x128xf32, #tpu.memory_space<vmem>>, vector<8x128xf32>
    %7 = arith.addf %5, %6 : vector<8x128xf32>
    %8 = arith.truncf %7 : vector<8x128xf32> to vector<8x128xbf16>
    %cst = arith.constant dense<0.000000e+00> : vector<8x8xf32>
    %9 = tpu.matmul %8, %8, %cst {dimension_numbers = #tpu.dot_dimension_numbers<[1], [1], [0], [0], [0, 0, 1, 0], [], []>} : vector<8x128xbf16>, vector<8x128xbf16>, vector<8x8xf32> -> vector<8x8xf32>
    %10 = tpu.iota {dimensions = array<i32: 1>} : vector<1x8xi32>
    %11 = vector.broadcast %1 : i32 to vector<1x8xi32>
    %12 = arith.cmpi slt, %10, %11 : vector<1x8xi32>
    %13 = tpu.iota {dimensions = array<i32: 0>} : vector<8x1xi32>
    %14 = vector.broadcast %1 : i32 to vector<8x1xi32>
    %15 = arith.cmpi slt, %13, %14 : vector<8x1xi32>
    %16 = vector.broadcast %12 : vector<1x8xi1> to vector<8x8xi1>
    %17 = vector.broadcast %15 : vector<8x1xi1> to vector<8x8xi1>
    %18 = arith.andi %16, %17 : vector<8x8xi1>
    %cst_4 = arith.constant 1.000000e-10 : f32
    %19 = vector.broadcast %cst_4 : f32 to vector<8x8xf32>
    %20 = arith.select %18, %9, %19 : vector<8x8xi1>, vector<8x8xf32>
    %cst_5 = arith.constant dense<0xFF800000> : vector<8xf32>
    %21 = vector.multi_reduction <maximumf>, %20, %cst_5 [1] : vector<8x8xf32> to vector<8xf32>
    %22 = vector.shape_cast %21 : vector<8xf32> to vector<8x1xf32>
    %23 = vector.broadcast %22 : vector<8x1xf32> to vector<8x8xf32>
    %24 = arith.subf %20, %23 : vector<8x8xf32>
    %25 = math.exp %24 : vector<8x8xf32>
    %cst_6 = arith.constant dense<0.000000e+00> : vector<8xf32>
    %26 = vector.multi_reduction <add>, %25, %cst_6 [1] : vector<8x8xf32> to vector<8xf32>
    %27 = vector.shape_cast %26 : vector<8xf32> to vector<8x1xf32>
    %28 = tpu.reciprocal %27 {approx = true} : vector<8x1xf32> -> vector<8x1xf32>
    %29 = vector.broadcast %28 : vector<8x1xf32> to vector<8x8xf32>
    %30 = arith.mulf %25, %29 : vector<8x8xf32>
    %31 = arith.truncf %5 : vector<8x128xf32> to vector<8x128xbf16>
    %32 = arith.truncf %30 : vector<8x8xf32> to vector<8x8xbf16>
    %cst_7 = arith.constant dense<0.000000e+00> : vector<8x128xf32>
    %33 = tpu.matmul %32, %31, %cst_7 {dimension_numbers = #tpu.dot_dimension_numbers<[1], [0], [0], [1], [0, 0, 1, 1], [], []>} : vector<8x8xbf16>, vector<8x128xbf16>, vector<8x128xf32> -> vector<8x128xf32>
    %34 = arith.truncf %33 : vector<8x128xf32> to vector<8x128xbf16>
    %c0_8 = arith.constant 0 : index
    %c0_9 = arith.constant 0 : index
    %35 = vector.load %arg5[%c0_8, %c0_9] : memref<128x384xbf16, #tpu.memory_space<vmem>>, vector<128x384xbf16>
    %cst_10 = arith.constant dense<0.000000e+00> : vector<8x384xf32>
    %36 = tpu.matmul %34, %35, %cst_10 {dimension_numbers = #tpu.dot_dimension_numbers<[1], [0], [0], [1], [0, 0, 1, 1], [], []>} : vector<8x128xbf16>, vector<128x384xbf16>, vector<8x384xf32> -> vector<8x384xf32>
    %c0_11 = arith.constant 0 : index
    %c0_12 = arith.constant 0 : index
    %37 = vector.load %arg8[%c0_11, %c0_12] : memref<1x384xf32, #tpu.memory_space<vmem>>, vector<1x384xf32>
    %38 = vector.broadcast %37 : vector<1x384xf32> to vector<8x384xf32>
    %39 = arith.addf %36, %38 : vector<8x384xf32>
    %c0_13 = arith.constant 0 : index
    %c0_14 = arith.constant 0 : index
    %40 = vector.load %arg6[%c0_13, %c0_14] : memref<128x256xbf16, #tpu.memory_space<vmem>>, vector<128x256xbf16>
    %cst_15 = arith.constant dense<0.000000e+00> : vector<8x256xf32>
    %41 = tpu.matmul %31, %40, %cst_15 {dimension_numbers = #tpu.dot_dimension_numbers<[1], [0], [0], [1], [0, 0, 1, 1], [], []>} : vector<8x128xbf16>, vector<128x256xbf16>, vector<8x256xf32> -> vector<8x256xf32>
    %42 = vector.extract_strided_slice %39 {offsets = [0, 0], sizes = [8, 128], strides = [1, 1]} : vector<8x384xf32> to vector<8x128xf32>
    %43 = vector.extract_strided_slice %41 {offsets = [0, 0], sizes = [8, 128], strides = [1, 1]} : vector<8x256xf32> to vector<8x128xf32>
    %44 = arith.addf %42, %43 : vector<8x128xf32>
    %45 = arith.negf %44 : vector<8x128xf32>
    %46 = math.exp %45 : vector<8x128xf32>
    %cst_16 = arith.constant 1.000000e+00 : f32
    %47 = vector.broadcast %cst_16 : f32 to vector<8x128xf32>
    %48 = arith.addf %47, %46 : vector<8x128xf32>
    %49 = arith.divf %47, %48 : vector<8x128xf32>
    %50 = vector.extract_strided_slice %39 {offsets = [0, 128], sizes = [8, 128], strides = [1, 1]} : vector<8x384xf32> to vector<8x128xf32>
    %51 = vector.extract_strided_slice %41 {offsets = [0, 128], sizes = [8, 128], strides = [1, 1]} : vector<8x256xf32> to vector<8x128xf32>
    %52 = arith.addf %50, %51 : vector<8x128xf32>
    %53 = arith.negf %52 : vector<8x128xf32>
    %54 = math.exp %53 : vector<8x128xf32>
    %cst_17 = arith.constant 1.000000e+00 : f32
    %55 = vector.broadcast %cst_17 : f32 to vector<8x128xf32>
    %56 = arith.addf %55, %54 : vector<8x128xf32>
    %57 = arith.divf %55, %56 : vector<8x128xf32>
    %58 = vector.extract_strided_slice %39 {offsets = [0, 256], sizes = [8, 128], strides = [1, 1]} : vector<8x384xf32> to vector<8x128xf32>
    %59 = arith.mulf %5, %57 : vector<8x128xf32>
    %60 = arith.truncf %59 : vector<8x128xf32> to vector<8x128xbf16>
    %c0_18 = arith.constant 0 : index
    %c0_19 = arith.constant 0 : index
    %61 = vector.load %arg7[%c0_18, %c0_19] : memref<128x128xbf16, #tpu.memory_space<vmem>>, vector<128x128xbf16>
    %cst_20 = arith.constant dense<0.000000e+00> : vector<8x128xf32>
    %62 = tpu.matmul %60, %61, %cst_20 {dimension_numbers = #tpu.dot_dimension_numbers<[1], [0], [0], [1], [0, 0, 1, 1], [], []>} : vector<8x128xbf16>, vector<128x128xbf16>, vector<8x128xf32> -> vector<8x128xf32>
    %63 = arith.addf %58, %62 : vector<8x128xf32>
    %64 = math.tanh %63 : vector<8x128xf32>
    %cst_21 = arith.constant 1.000000e+00 : f32
    %65 = vector.broadcast %cst_21 : f32 to vector<8x128xf32>
    %66 = arith.subf %65, %49 : vector<8x128xf32>
    %67 = arith.mulf %5, %66 : vector<8x128xf32>
    %68 = arith.mulf %64, %49 : vector<8x128xf32>
    %69 = arith.addf %67, %68 : vector<8x128xf32>
    %c0_22 = arith.constant 0 : index
    %c0_23 = arith.constant 0 : index
    %70 = vector.load %arg11[%c0_22, %c0_23] : memref<8x128xf32, #tpu.memory_space<vmem>>, vector<8x128xf32>
    tpu.vector_store %arg11[%c0_22, %c0_23], %69 {strides = array<i32>} : memref<8x128xf32, #tpu.memory_space<vmem>>, vector<8x128xf32>,
    %c1_i32 = arith.constant 1 : i32
    %71 = arith.cmpi eq, %arg1, %c1_i32 : i32
    %72 = arith.extui %71 : i1 to i32
    %c0_i32_24 = arith.constant 0 : i32
    %73 = arith.cmpi ne, %72, %c0_i32_24 : i32
    scf.if %73 {
      %c0_25 = arith.constant 0 : index
      %c0_26 = arith.constant 0 : index
      %c0_27 = arith.constant 0 : index
      %74 = vector.load %arg9[%c0_25, %c0_26, %c0_27] : memref<1x8x128xf32, #tpu.memory_space<vmem>>, vector<1x8x128xf32>
      %75 = vector.shape_cast %74 : vector<1x8x128xf32> to vector<8x128xf32>
      %76 = vector.shape_cast %69 : vector<8x128xf32> to vector<1x8x128xf32>
      tpu.vector_store %arg9[%c0_25, %c0_26, %c0_27], %76 {strides = array<i32>} : memref<1x8x128xf32, #tpu.memory_space<vmem>>, vector<1x8x128xf32>,
      %77 = tpu.iota {dimensions = array<i32: 0>} : vector<8x1xi32>
      %78 = vector.broadcast %1 : i32 to vector<8x1xi32>
      %79 = arith.cmpi slt, %77, %78 : vector<8x1xi32>
      %cst_28 = arith.constant 0.000000e+00 : f32
      %80 = vector.shape_cast %79 : vector<8x1xi1> to vector<8x1xi1>
      %81 = vector.broadcast %80 : vector<8x1xi1> to vector<8x128xi1>
      %82 = vector.broadcast %cst_28 : f32 to vector<8x128xf32>
      %83 = arith.select %81, %69, %82 : vector<8x128xi1>, vector<8x128xf32>
      %cst_29 = arith.constant dense<0.000000e+00> : vector<128xf32>
      %84 = vector.multi_reduction <add>, %83, %cst_29 [0] : vector<8x128xf32> to vector<128xf32>
      %85 = vector.shape_cast %84 : vector<128xf32> to vector<1x128xf32>
      %86 = arith.sitofp %1 : i32 to f32
      %87 = vector.broadcast %86 : f32 to vector<1x128xf32>
      %88 = arith.divf %85, %87 : vector<1x128xf32>
      %c0_30 = arith.constant 0 : index
      %c0_31 = arith.constant 0 : index
      %c0_32 = arith.constant 0 : index
      %89 = vector.load %arg10[%c0_30, %c0_31, %c0_32] : memref<1x1x128xf32, #tpu.memory_space<vmem>>, vector<1x1x128xf32>
      %90 = vector.shape_cast %89 : vector<1x1x128xf32> to vector<1x128xf32>
      %91 = vector.shape_cast %88 : vector<1x128xf32> to vector<1x1x128xf32>
      tpu.vector_store %arg10[%c0_30, %c0_31, %c0_32], %91 {strides = array<i32>} : memref<1x1x128xf32, #tpu.memory_space<vmem>>, vector<1x1x128xf32>,
    } else {
    }
    return
  }
  func.func @transform_0(%arg0: i32, %arg1: i32, %arg2: memref<2xi32, #tpu.memory_space<smem>>) -> (i32, i32, i32) {
    %c0_i32 = arith.constant 0 : i32
    %c0_i32_0 = arith.constant 0 : i32
    %c0_i32_1 = arith.constant 0 : i32
    return %arg0, %c0_i32, %c0_i32_0 : i32, i32, i32
  }
  func.func @transform_1(%arg0: i32, %arg1: i32, %arg2: memref<2xi32, #tpu.memory_space<smem>>) -> (i32, i32) {
    %c0_i32 = arith.constant 0 : i32
    %c0_i32_0 = arith.constant 0 : i32
    %c0_i32_1 = arith.constant 0 : i32
    return %c0_i32, %c0_i32_0 : i32, i32
  }
  func.func @transform_2(%arg0: i32, %arg1: i32, %arg2: memref<2xi32, #tpu.memory_space<smem>>) -> (i32, i32) {
    %c0_i32 = arith.constant 0 : i32
    %c0_i32_0 = arith.constant 0 : i32
    %c0_i32_1 = arith.constant 0 : i32
    return %c0_i32, %c0_i32_0 : i32, i32
  }
  func.func @transform_3(%arg0: i32, %arg1: i32, %arg2: memref<2xi32, #tpu.memory_space<smem>>) -> (i32, i32) {
    %c0_i32 = arith.constant 0 : i32
    %c0_i32_0 = arith.constant 0 : i32
    %c0_i32_1 = arith.constant 0 : i32
    return %c0_i32, %c0_i32_0 : i32, i32
  }
  func.func @transform_4(%arg0: i32, %arg1: i32, %arg2: memref<2xi32, #tpu.memory_space<smem>>) -> (i32, i32) {
    %c0_i32 = arith.constant 0 : i32
    %c0_i32_0 = arith.constant 0 : i32
    %c0_i32_1 = arith.constant 0 : i32
    return %c0_i32, %c0_i32_0 : i32, i32
  }
  func.func @transform_5(%arg0: i32, %arg1: i32, %arg2: memref<2xi32, #tpu.memory_space<smem>>) -> (i32, i32) {
    %c0_i32 = arith.constant 0 : i32
    %c0_i32_0 = arith.constant 0 : i32
    %c0_i32_1 = arith.constant 0 : i32
    return %c0_i32, %c0_i32_0 : i32, i32
  }
  func.func @transform_6(%arg0: i32, %arg1: i32, %arg2: memref<2xi32, #tpu.memory_space<smem>>) -> (i32, i32, i32) {
    %c0_i32 = arith.constant 0 : i32
    %c0_i32_0 = arith.constant 0 : i32
    %c0_i32_1 = arith.constant 0 : i32
    return %arg0, %c0_i32, %c0_i32_0 : i32, i32, i32
  }
  func.func @transform_7(%arg0: i32, %arg1: i32, %arg2: memref<2xi32, #tpu.memory_space<smem>>) -> (i32, i32, i32) {
    %c0_i32 = arith.constant 0 : i32
    %c0_i32_0 = arith.constant 0 : i32
    %c0_i32_1 = arith.constant 0 : i32
    return %arg0, %c0_i32, %c0_i32_0 : i32, i32, i32
  }
}

</mosaic_0001>

<llo_original>
// kernel: tpu_custom_call.1
$region0: #{tpu_custom_call.1}
  #allocation0 [shape = 'u32[]', space=smem, size = 0x4, offset = 0x4, fixed_abs, tag = 'smem constant byte address 0x4 - core index']
  #allocation1 [shape = 'u32[144,128]{1,0:T(1,128)}', space=vmem, size = 0x12000, scoped, tag = 'internal scratch']
  #allocation2 [shape = 'f32[8,128]{1,0:T(8,128)}', space=vmem, size = 0x1000, scoped, tag = 'scratch operand']
  #allocation3 [shape = 's32[1]{0}', space=sflag, size = 0x4, scoped, tag = 'scoped memory for tpu_custom_call.1']
  #allocation4 [shape = 'u8[512]{0}', space=smem, size = 0x200, scoped, tag = 'prefetched SMEM operand 0']
  %s0 = inlined_call_operand.hbm [shape: s32[2], index: 0, kind: input, shape index: {}]
  %s1 = inlined_call_operand.hbm [shape: f32[2,8,128], index: 1, kind: input, shape index: {}]
  %s2 = inlined_call_operand.hbm [shape: f32[8,128], index: 2, kind: input, shape index: {}]
  %s3 = inlined_call_operand.hbm [shape: bf16[128,384], index: 3, kind: input, shape index: {}]
  %s4 = inlined_call_operand.hbm [shape: bf16[128,256], index: 4, kind: input, shape index: {}]
  %s5 = inlined_call_operand.hbm [shape: bf16[128,128], index: 5, kind: input, shape index: {}]
  %s6 = inlined_call_operand.vmem [shape: f32[1,384], index: 6, kind: input, shape index: {}]
  %s7 = inlined_call_operand.hbm [shape: f32[2,8,128], index: 7, kind: output, shape index: {0}]
  %s8 = inlined_call_operand.hbm [shape: f32[2,1,128], index: 8, kind: output, shape index: {1}]
  %9 = xla_tuple %s7, %s8
  %s10 = sld [smem:[#allocation0]]
  $region93: #{tpu_custom_call.1} parent=0
    _
  %s12 = ssub.s32 1, %s10
  %s13 = scalar_select 0, %s12, %s10
  %15 = dma.hbm_to_smem %s0, 16, [#allocation4], [#allocation3]
  %16 = dma.done [#allocation3], 16
  %17 = sfence
  $region1: #{tpu_custom_call.1} parent=0
    #allocation5 [shape = 'u8[8192]{0}', space=vmem, size = 0x2000, scoped, tag = 'input window, operand 1']
    #allocation6 [shape = 's32[2]{0}', space=sflag, size = 0x8, scoped, tag = 'scoped memory for tpu_custom_call.1']
    #allocation7 [shape = 's32[2]{0}', space=sflag, size = 0x8, scoped, tag = 'scoped memory for tpu_custom_call.1']
    #allocation8 [shape = 'u8[4096]{0}', space=vmem, size = 0x1000, scoped, tag = 'input window, operand 2, single buffered']
    #allocation9 [shape = 's32[1]{0}', space=sflag, size = 0x4, scoped, tag = 'scoped memory for tpu_custom_call.1']
    #allocation10 [shape = 'u8[98304]{0}', space=vmem, size = 0x18000, scoped, tag = 'input window, operand 3, single buffered']
    #allocation11 [shape = 'u8[65536]{0}', space=vmem, size = 0x10000, scoped, tag = 'input window, operand 4, single buffered']
    #allocation12 [shape = 's32[1]{0}', space=sflag, size = 0x4, scoped, tag = 'scoped memory for tpu_custom_call.1']
    #allocation13 [shape = 'u8[32768]{0}', space=vmem, size = 0x8000, scoped, tag = 'input window, operand 5, single buffered']
    #allocation14 [shape = 'u8[8192]{0}', space=vmem, size = 0x2000, scoped, tag = 'output window, operand 0']
    #allocation15 [shape = 'u8[1024]{0}', space=vmem, size = 0x400, scoped, tag = 'output window, operand 1']
    #allocation16 [shape = 's32[2]{0}', space=sflag, size = 0x8, scoped, tag = 'scoped memory for tpu_custom_call.1']
    %18 = vsyncpa [#allocation6], 0
    %s19 = scalar_lea.sflag [#allocation6], 1
    %20 = vsyncpa %s19, 0
    %21 = vsyncpa [#allocation9], 0
    %22 = vsyncpa [#allocation12], 0
    %23 = vsyncpa [#allocation7], 0
    %s24 = scalar_lea.sflag [#allocation7], 1
    %25 = vsyncpa %s24, 0
    %26 = vsyncpa [#allocation16], 0
    %s27 = scalar_lea.sflag [#allocation16], 1
    %28 = vsyncpa %s27, 0
    loop: start=0, step=1, limit=6
    $region2: #{tpu_custom_call.1} parent=1 // loop_pre_header
      _
    $region3: #{tpu_custom_call.1} parent=1 // loop_header
      %s30 = sphi 0, %s34
      %p31 = scmp.ge.s32.totalorder %s30, 6
      %s37 = sphi 0, %s49
      %s38 = sphi 0, %s45
      %s39 = sphi 0, %s37
      %s40 = sphi 0, %s38
      %s41 = sphi 0, %s39
      %s42 = sphi 0, %s40
      %s52 = sphi 0, %s54
      %s55 = sphi 0, %s52
      %s56 = sphi 0, %s55
      %s72 = sphi 0, %s56
      %s76 = sphi 0, %s76
      %s78 = sphi 0, %s76
      %s79 = sphi 0, %s78
      %s93 = sphi 0, %s79
      %s97 = sphi 0, %s97
      %s99 = sphi 0, %s97
      %s100 = sphi 0, %s99
      %s114 = sphi 0, %s100
      %s118 = sphi 0, %s118
      %s120 = sphi 0, %s118
      %s121 = sphi 0, %s120
      %s135 = sphi 0, %s121
      %s139 = sphi 0, %s139
      %s141 = sphi 0, %s139
      %s142 = sphi 0, %s141
      %s156 = sphi 0, %s142
      %s160 = sphi 0, %s160
      %s162 = sphi 0, %s160
      %s163 = sphi 0, %s162
      %s177 = sphi 0, %s163
      %s183 = sphi 0, %s185
      %s186 = sphi 0, %s183
      %s187 = sphi 0, %s186
      %s203 = sphi 0, %s187
      %s209 = sphi 0, %s211
      %s212 = sphi 0, %s209
      %s213 = sphi 0, %s212
      %s229 = sphi 0, %s213
    $region4: #{tpu_custom_call.1} parent=1 // loop_header_branch
      %33 = sbr.rel (%p31) target = $region8
    $region5: #{tpu_custom_call.1} parent=1 // loop_body
      %s35 = ssub.s32 %s30, 1
      %s36 = ssub.s32 %s30, 2
      %s43 = sadd.s32 1, %s38
      %p44 = scmp.ge.s32.totalorder %s43, 2
      %s45 = scalar_select %p44, 0, %s43
      %s46 = sadd.s32 1, %s37
      %s47 = scalar_select %p44, %s46, %s37
      %p48 = scmp.ge.s32.totalorder %s47, 2
      %s49 = scalar_select %p48, 0, %s47
      %s50 = ssub.s32 %s37, %s49
      %p51 = scmp.eq.s32.totalorder %s50, 0
      %s53 = sadd.s32 %s52, 1
      %s54 = scalar_select %p51, %s52, %s53
      %p57 = pneg %p51
      %p58 = scmp.eq.s32.totalorder %s30, 3
      %p59 = por %p57, %p58
      %p60 = scmp.ne.s32.totalorder %s52, %s55
      %p61 = scmp.eq.s32.totalorder %s30, 0
      %p62 = por %p60, %p61
      %p63 = scmp.ne.s32.totalorder %s52, %s55
      %p64 = scmp.eq.s32.totalorder %s35, 3
      %p65 = por %p63, %p64
      %p66 = scmp.ne.s32.totalorder %s55, %s56
      %p67 = scmp.eq.s32.totalorder %s35, 0
      %p68 = por %p66, %p67
      %p69 = scmp.ne.s32.totalorder %s55, %s56
      %p70 = scmp.eq.s32.totalorder %s36, 3
      %p71 = por %p69, %p70
      %p73 = scmp.ne.s32.totalorder %s56, %s72
      %p74 = scmp.eq.s32.totalorder %s36, 0
      %p75 = por %p73, %p74
      %s77 = sadd.s32 %s76, 1
      %p80 = scmp.eq.s32.totalorder %s30, 3
      %p81 = scmp.ne.s32.totalorder %s76, %s78
      %p82 = scmp.eq.s32.totalorder %s30, 0
      %p83 = por %p81, %p82
      %p84 = scmp.ne.s32.totalorder %s76, %s78
      %p85 = scmp.eq.s32.totalorder %s35, 3
      %p86 = por %p84, %p85
      %p87 = scmp.ne.s32.totalorder %s78, %s79
      %p88 = scmp.eq.s32.totalorder %s35, 0
      %p89 = por %p87, %p88
      %p90 = scmp.ne.s32.totalorder %s78, %s79
      %p91 = scmp.eq.s32.totalorder %s36, 3
      %p92 = por %p90, %p91
      %p94 = scmp.ne.s32.totalorder %s79, %s93
      %p95 = scmp.eq.s32.totalorder %s36, 0
      %p96 = por %p94, %p95
      %s98 = sadd.s32 %s97, 1
      %p101 = scmp.eq.s32.totalorder %s30, 3
      %p102 = scmp.ne.s32.totalorder %s97, %s99
      %p103 = scmp.eq.s32.totalorder %s30, 0
      %p104 = por %p102, %p103
      %p105 = scmp.ne.s32.totalorder %s97, %s99
      %p106 = scmp.eq.s32.totalorder %s35, 3
      %p107 = por %p105, %p106
      %p108 = scmp.ne.s32.totalorder %s99, %s100
      %p109 = scmp.eq.s32.totalorder %s35, 0
      %p110 = por %p108, %p109
      %p111 = scmp.ne.s32.totalorder %s99, %s100
      %p112 = scmp.eq.s32.totalorder %s36, 3
      %p113 = por %p111, %p112
      %p115 = scmp.ne.s32.totalorder %s100, %s114
      %p116 = scmp.eq.s32.totalorder %s36, 0
      %p117 = por %p115, %p116
      %s119 = sadd.s32 %s118, 1
      %p122 = scmp.eq.s32.totalorder %s30, 3
      %p123 = scmp.ne.s32.totalorder %s118, %s120
      %p124 = scmp.eq.s32.totalorder %s30, 0
      %p125 = por %p123, %p124
      %p126 = scmp.ne.s32.totalorder %s118, %s120
      %p127 = scmp.eq.s32.totalorder %s35, 3
      %p128 = por %p126, %p127
      %p129 = scmp.ne.s32.totalorder %s120, %s121
      %p130 = scmp.eq.s32.totalorder %s35, 0
      %p131 = por %p129, %p130
      %p132 = scmp.ne.s32.totalorder %s120, %s121
      %p133 = scmp.eq.s32.totalorder %s36, 3
      %p134 = por %p132, %p133
      %p136 = scmp.ne.s32.totalorder %s121, %s135
      %p137 = scmp.eq.s32.totalorder %s36, 0
      %p138 = por %p136, %p137
      %s140 = sadd.s32 %s139, 1
      %p143 = scmp.eq.s32.totalorder %s30, 3
      %p144 = scmp.ne.s32.totalorder %s139, %s141
      %p145 = scmp.eq.s32.totalorder %s30, 0
      %p146 = por %p144, %p145
      %p147 = scmp.ne.s32.totalorder %s139, %s141
      %p148 = scmp.eq.s32.totalorder %s35, 3
      %p149 = por %p147, %p148
      %p150 = scmp.ne.s32.totalorder %s141, %s142
      %p151 = scmp.eq.s32.totalorder %s35, 0
      %p152 = por %p150, %p151
      %p153 = scmp.ne.s32.totalorder %s141, %s142
      %p154 = scmp.eq.s32.totalorder %s36, 3
      %p155 = por %p153, %p154
      %p157 = scmp.ne.s32.totalorder %s142, %s156
      %p158 = scmp.eq.s32.totalorder %s36, 0
      %p159 = por %p157, %p158
      %s161 = sadd.s32 %s160, 1
      %p164 = scmp.eq.s32.totalorder %s30, 3
      %p165 = scmp.ne.s32.totalorder %s160, %s162
      %p166 = scmp.eq.s32.totalorder %s30, 0
      %p167 = por %p165, %p166
      %p168 = scmp.ne.s32.totalorder %s160, %s162
      %p169 = scmp.eq.s32.totalorder %s35, 3
      %p170 = por %p168, %p169
      %p171 = scmp.ne.s32.totalorder %s162, %s163
      %p172 = scmp.eq.s32.totalorder %s35, 0
      %p173 = por %p171, %p172
      %p174 = scmp.ne.s32.totalorder %s162, %s163
      %p175 = scmp.eq.s32.totalorder %s36, 3
      %p176 = por %p174, %p175
      %p178 = scmp.ne.s32.totalorder %s163, %s177
      %p179 = scmp.eq.s32.totalorder %s36, 0
      %p180 = por %p178, %p179
      %s181 = ssub.s32 %s37, %s49
      %p182 = scmp.eq.s32.totalorder %s181, 0
      %s184 = sadd.s32 %s183, 1
      %s185 = scalar_select %p182, %s183, %s184
      %p188 = pneg %p182
      %p189 = scmp.eq.s32.totalorder %s30, 3
      %p190 = por %p188, %p189
      %p191 = scmp.ne.s32.totalorder %s183, %s186
      %p192 = scmp.eq.s32.totalorder %s30, 0
      %p193 = por %p191, %p192
      %p194 = scmp.ne.s32.totalorder %s183, %s186
      %p195 = scmp.eq.s32.totalorder %s35, 3
      %p196 = por %p194, %p195
      %p197 = scmp.ne.s32.totalorder %s186, %s187
      %p198 = scmp.eq.s32.totalorder %s35, 0
      %p199 = por %p197, %p198
      %p200 = scmp.ne.s32.totalorder %s186, %s187
      %p201 = scmp.eq.s32.totalorder %s36, 3
      %p202 = por %p200, %p201
      %p204 = scmp.ne.s32.totalorder %s187, %s203
      %p205 = scmp.eq.s32.totalorder %s36, 0
      %p206 = por %p204, %p205
      %s207 = ssub.s32 %s37, %s49
      %p208 = scmp.eq.s32.totalorder %s207, 0
      %s210 = sadd.s32 %s209, 1
      %s211 = scalar_select %p208, %s209, %s210
      %p214 = pneg %p208
      %p215 = scmp.eq.s32.totalorder %s30, 3
      %p216 = por %p214, %p215
      %p217 = scmp.ne.s32.totalorder %s209, %s212
      %p218 = scmp.eq.s32.totalorder %s30, 0
      %p219 = por %p217, %p218
      %p220 = scmp.ne.s32.totalorder %s209, %s212
      %p221 = scmp.eq.s32.totalorder %s35, 3
      %p222 = por %p220, %p221
      %p223 = scmp.ne.s32.totalorder %s212, %s213
      %p224 = scmp.eq.s32.totalorder %s35, 0
      %p225 = por %p223, %p224
      %p226 = scmp.ne.s32.totalorder %s212, %s213
      %p227 = scmp.eq.s32.totalorder %s36, 3
      %p228 = por %p226, %p227
      %p230 = scmp.ne.s32.totalorder %s213, %s229
      %p231 = scmp.eq.s32.totalorder %s36, 0
      %p232 = por %p230, %p231
      %p233 = scmp.le.s32.totalorder 1, %s30
      %p234 = scmp.lt.s32.totalorder %s30, 5
      %p235 = pnand %p233, %p234
      %p236 = pneg %p235
      // Predicated region
      $region9: #{tpu_custom_call.1} parent=5 // pred_check
        _
      $region10: #{tpu_custom_call.1} parent=5 // pred_check_branch
        %238 = sbr.rel (%p235) target = $region12
      $region11: #{tpu_custom_call.1} parent=5 // pred_region
        %s239 = ssub.s32 %s30, 1
        // Predicated region
        $region13: #{tpu_custom_call.1} parent=11 // pred_check
          %p240 = pneg %p89
        $region14: #{tpu_custom_call.1} parent=11 // pred_check_branch
          %242 = sbr.rel (%p240) target = $region16
        $region15: #{tpu_custom_call.1} parent=11 // pred_region
          %s244 = ssub.s32 128, 128
          %245 = vsyncadd [#allocation9], %s244
          %s247 = sshll.u32 [#allocation8], 4
          %s248 = int_to_ptr.vmem [resolvable:$true] %s247
          %250 = dma.hbm_to_vmem [thread:$0]  %s2, 128, %s248, [#allocation9]
        $region16: #{tpu_custom_call.1} parent=11 // pred_fallthru
          _
        // Predicated region
        $region17: #{tpu_custom_call.1} parent=11 // pred_check
          %p251 = pneg %p110
        $region18: #{tpu_custom_call.1} parent=11 // pred_check_branch
          %253 = sbr.rel (%p251) target = $region20
        $region19: #{tpu_custom_call.1} parent=11 // pred_region
          %s255 = ssub.s32 3072, 3072
          %256 = vsyncadd [#allocation9], %s255
          %s257 = sshll.u32 [#allocation10], 4
          %s258 = int_to_ptr.vmem [resolvable:$true] %s257
          %263 = dma.hbm_to_vmem [thread:$0]  %s3, 3072, %s258, [#allocation9], 192, 192, 12
        $region20: #{tpu_custom_call.1} parent=11 // pred_fallthru
          _
        // Predicated region
        $region21: #{tpu_custom_call.1} parent=11 // pred_check
          %p264 = pneg %p131
        $region22: #{tpu_custom_call.1} parent=11 // pred_check_branch
          %266 = sbr.rel (%p264) target = $region24
        $region23: #{tpu_custom_call.1} parent=11 // pred_region
          %s268 = ssub.s32 2048, 2048
          %269 = vsyncadd [#allocation12], %s268
          %s270 = sshll.u32 [#allocation11], 4
          %s271 = int_to_ptr.vmem [resolvable:$true] %s270
          %276 = dma.hbm_to_vmem [thread:$0]  %s4, 2048, %s271, [#allocation12], 128, 128, 8
        $region24: #{tpu_custom_call.1} parent=11 // pred_fallthru
          _
        // Predicated region
        $region25: #{tpu_custom_call.1} parent=11 // pred_check
          %p277 = pneg %p152
        $region26: #{tpu_custom_call.1} parent=11 // pred_check_branch
          %279 = sbr.rel (%p277) target = $region28
        $region27: #{tpu_custom_call.1} parent=11 // pred_region
          %s281 = ssub.s32 1024, 1024
          %282 = vsyncadd [#allocation12], %s281
          %s283 = sshll.u32 [#allocation13], 4
          %s284 = int_to_ptr.vmem [resolvable:$true] %s283
          %289 = dma.hbm_to_vmem [thread:$0]  %s5, 1024, %s284, [#allocation12], 64, 64, 4
        $region28: #{tpu_custom_call.1} parent=11 // pred_fallthru
          _
        // Predicated region
        $region29: #{tpu_custom_call.1} parent=11 // pred_check
          %p290 = pneg %p173
        $region30: #{tpu_custom_call.1} parent=11 // pred_check_branch
          %292 = sbr.rel (%p290) target = $region32
        $region31: #{tpu_custom_call.1} parent=11 // pred_region
          _
        $region32: #{tpu_custom_call.1} parent=11 // pred_fallthru
          _
      $region12: #{tpu_custom_call.1} parent=5 // pred_fallthru
        _
      %p293 = scmp.lt.s32.totalorder %s30, 4
      // Predicated region
      $region33: #{tpu_custom_call.1} parent=5 // pred_check
        %p294 = pneg %p293
      $region34: #{tpu_custom_call.1} parent=5 // pred_check_branch
        %296 = sbr.rel (%p294) target = $region36
      $region35: #{tpu_custom_call.1} parent=5 // pred_region
        // Predicated region
        $region37: #{tpu_custom_call.1} parent=35 // pred_check
          %p297 = pneg %p62
        $region38: #{tpu_custom_call.1} parent=35 // pred_check_branch
          %299 = sbr.rel (%p297) target = $region40
        $region39: #{tpu_custom_call.1} parent=35 // pred_region
          %s300 = sand.u32 %s52, 1
          %s301 = scalar_lea.sflag [#allocation6], %s300
          %s302 = sand.u32 %s52, 1
          %s303 = smul.addr %s302, 8
          %s304 = scalar_lea.vmem [#allocation5], %s303
          %s306 = ssub.s32 128, 128
          %307 = vsyncadd %s301, %s306
          %s308 = smul.addr %s37, 128
          %s309 = scalar_lea.hbm %s1, %s308
          %s311 = sshll.u32 %s304, 4
          %s312 = int_to_ptr.vmem [resolvable:$true] %s311
          %314 = dma.hbm_to_vmem [thread:$0]  %s309, 128, %s312, %s301
        $region40: #{tpu_custom_call.1} parent=35 // pred_fallthru
          _
      $region36: #{tpu_custom_call.1} parent=5 // pred_fallthru
        _
      %p315 = scmp.le.s32.totalorder 1, %s30
      %p316 = scmp.lt.s32.totalorder %s30, 5
      %p317 = pnand %p315, %p316
      %p318 = pneg %p317
      // Predicated region
      $region41: #{tpu_custom_call.1} parent=5 // pred_check
        _
      $region42: #{tpu_custom_call.1} parent=5 // pred_check_branch
        %320 = sbr.rel (%p317) target = $region44
      $region43: #{tpu_custom_call.1} parent=5 // pred_region
        %s321 = ssub.s32 %s30, 1
        %s322 = sand.u32 %s55, 1
        %s323 = scalar_lea.sflag [#allocation6], %s322
        %s324 = sand.u32 %s55, 1
        %s325 = smul.addr %s324, 8
        %s326 = scalar_lea.vmem [#allocation5], %s325
        // Predicated region
        $region45: #{tpu_custom_call.1} parent=43 // pred_check
          %p327 = pneg %p68
        $region46: #{tpu_custom_call.1} parent=43 // pred_check_branch
          %329 = sbr.rel (%p327) target = $region48
        $region47: #{tpu_custom_call.1} parent=43 // pred_region
          %330 = dma.done %s323, 128
        $region48: #{tpu_custom_call.1} parent=43 // pred_fallthru
          _
        // Predicated region
        $region49: #{tpu_custom_call.1} parent=43 // pred_check
          %p331 = pneg %p89
        $region50: #{tpu_custom_call.1} parent=43 // pred_check_branch
          %333 = sbr.rel (%p331) target = $region52
        $region51: #{tpu_custom_call.1} parent=43 // pred_region
          %334 = dma.done [#allocation9], 128
        $region52: #{tpu_custom_call.1} parent=43 // pred_fallthru
          _
        // Predicated region
        $region53: #{tpu_custom_call.1} parent=43 // pred_check
          %p335 = pneg %p110
        $region54: #{tpu_custom_call.1} parent=43 // pred_check_branch
          %337 = sbr.rel (%p335) target = $region56
        $region55: #{tpu_custom_call.1} parent=43 // pred_region
          %338 = dma.done [#allocation9], 3072
        $region56: #{tpu_custom_call.1} parent=43 // pred_fallthru
          _
        // Predicated region
        $region57: #{tpu_custom_call.1} parent=43 // pred_check
          %p339 = pneg %p131
        $region58: #{tpu_custom_call.1} parent=43 // pred_check_branch
          %341 = sbr.rel (%p339) target = $region60
        $region59: #{tpu_custom_call.1} parent=43 // pred_region
          %342 = dma.done [#allocation12], 2048
        $region60: #{tpu_custom_call.1} parent=43 // pred_fallthru
          _
        // Predicated region
        $region61: #{tpu_custom_call.1} parent=43 // pred_check
          %p343 = pneg %p152
        $region62: #{tpu_custom_call.1} parent=43 // pred_check_branch
          %345 = sbr.rel (%p343) target = $region64
        $region63: #{tpu_custom_call.1} parent=43 // pred_region
          %346 = dma.done [#allocation12], 1024
        $region64: #{tpu_custom_call.1} parent=43 // pred_fallthru
          _
        %s347 = sand.u32 %s55, 1
        %s348 = scalar_lea.sflag [#allocation6], %s347
        %s349 = sand.u32 %s55, 1
        %s350 = smul.addr %s349, 8
        %s351 = scalar_lea.vmem [#allocation5], %s350
        %p352 = pneg %p68
        %p353 = pneg %p65
        %p354 = pneg %p89
        %p355 = pneg %p86
        %p356 = pneg %p110
        %p357 = pneg %p107
        %p358 = pneg %p131
        %p359 = pneg %p128
        %p360 = pneg %p152
        %p361 = pneg %p149
        %p362 = pneg %p173
        %p363 = pneg %p170
        %p364 = pneg %p199
        %p365 = pneg %p196
        %s366 = sand.u32 %s186, 1
        %s367 = scalar_lea.sflag [#allocation7], %s366
        %s368 = sand.u32 %s186, 1
        %s369 = smul.addr %s368, 8
        %s370 = scalar_lea.vmem [#allocation14], %s369
        %p371 = pneg %p225
        %p372 = pneg %p222
        %s373 = sand.u32 %s212, 1
        %s374 = scalar_lea.sflag [#allocation16], %s373
        %s375 = sand.u32 %s212, 1
        %s376 = scalar_lea.vmem [#allocation15], %s375
        %s378 = sld [smem:[#allocation4 + %s39]]
        %p379 = scmp.eq.s32.totalorder %s40, 0
        // Predicated region
        $region65: #{tpu_custom_call.1} parent=43 // pred_check
          %p380 = pneg %p379
        $region66: #{tpu_custom_call.1} parent=43 // pred_check_branch
          %382 = sbr.rel (%p380) target = $region68
        $region67: #{tpu_custom_call.1} parent=43 // pred_region
          %v383 = vld [vmem:[%s326] sm:$0xff]
          %384 = vst [vmem:[#allocation2] sm:$0xff] %v383
        $region68: #{tpu_custom_call.1} parent=43 // pred_fallthru
          _
        %v385 = vld [vmem:[#allocation2] sm:$0xff]
        %v386 = vld [vmem:[#allocation8] sm:$0xff]
        %v387 = vadd.f32 %v385, %v386
        %v388 = vpack.c.bf16 %v387, %v387
        %389 = vmatprep.subr.bf16.mxu0 0
        %390 = vmatpush1.bf16.xpose.msra.mxu0 %v388
        %391 = vmatprep.subr.bf16.mxu0 0
        %392 = vmatpush1.bf16.xpose.msra.mxu0 0
        %393 = vmatprep.subr.bf16.mxu0 0
        %394 = vmatpush1.bf16.xpose.msra.mxu0 0
        %395 = vmatprep.subr.bf16.mxu0 0
        %396 = vmatpush1.bf16.xpose.msra.mxu0 0
        %397 = vmatprep.subr.bf16.mxu0 0
        %398 = vmatpush1.bf16.xpose.msra.mxu0 0
        %399 = vmatprep.subr.bf16.mxu0 0
        %400 = vmatpush1.bf16.xpose.msra.mxu0 0
        %401 = vmatprep.subr.bf16.mxu0 0
        %402 = vmatpush1.bf16.xpose.msra.mxu0 0
        %403 = vmatprep.subr.bf16.mxu0 0
        %404 = vmatpush1.bf16.xpose.msra.mxu0 0
        %405 = vmatprep.subr.bf16.mxu0 0
        %406 = vmatpush1.bf16.xpose.msra.mxu0 0
        %407 = vmatprep.subr.bf16.mxu0 0
        %408 = vmatpush1.bf16.xpose.msra.mxu0 0
        %409 = vmatprep.subr.bf16.mxu0 0
        %410 = vmatpush1.bf16.xpose.msra.mxu0 0
        %411 = vmatprep.subr.bf16.mxu0 0
        %412 = vmatpush1.bf16.xpose.msra.mxu0 0
        %413 = vmatprep.subr.bf16.mxu0 0
        %414 = vmatpush1.bf16.xpose.msra.mxu0 0
        %415 = vmatprep.subr.bf16.mxu0 0
        %416 = vmatpush1.bf16.xpose.msra.mxu0 0
        %417 = vmatprep.subr.bf16.mxu0 0
        %418 = vmatpush1.bf16.xpose.msra.mxu0 0
        %419 = vmatprep.subr.bf16.mxu0 0
        %420 = vmatpush1.bf16.xpose.msra.mxu0 0
        %421 = vmatprep.mubr.bf16.mxu0 0
        %422 = vmatmul.mubr.bf16.gmra.mrb[0].mxu0 %v388
        %v423 = vpop.f32.mrb[0].mxu0
        %v424 = vadd.f32 0.0, %v423
        %v425 = vpop.f32.mrb[0].mxu0
        %v426 = vpop.f32.mrb[0].mxu0
        %v427 = vpop.f32.mrb[0].mxu0
        %428 = vdwg.mxu0
        %v429 = vlaneseq
        %v430 = vand.u32 %v429, 127
        %v431 = vstv %s378
        %vm432 = vcmp.lt.s32.totalorder %v430, %v431
        %v433 = vlaneseq
        %v434 = vshrl.u32 %v433, 7
        %vm435 = vcmp.lt.s32.totalorder %v434, %v431
        %v436 = vsel %vm432, 1, 0
        %vm437 = vcmp.eq.s32.totalorder %v436, 1
        %v438 = vsel %vm435, 1, 0
        %vm439 = vcmp.eq.s32.totalorder %v438, 1
        %vm440 = vmand %vm437, %vm439
        %v441 = vsel %vm440, %v424, 1e-10
        %vm442 = vcmask 64512
        %v443 = vsel %vm442, %v441, -inf
        %444 = vmax.xlane.f32.xlu0 %v443
        %v445 = vpop.xlane.xlu0 %444
        %v446 = vsub.f32 %v441, %v445
        %v447 = vmul.f32 %v446, 1.442695
        %v448 = vpow.pop %v447
        %v449 = vsel %vm442, %v448, 0.0
        %450 = vadd.xlane.f32.xlu0 %v449
        %v451 = vpop.xlane.xlu0 %450
        %v452 = vrcp.pop %v451
        %v453 = vmul.f32 %v448, %v452
        %v454 = vpack.c.bf16 %v385, %v385
        %v455 = vpack.c.bf16 %v453, %v453
        %v457 = vsel %vm442, %v455, 0
        %vm459 = vcmask 1043456
        %v461 = vsel %vm459, %v454, 0
        %463 = vmatprep.subr.bf16.mxu0 0
        %464 = vmatpush1.bf16.msra.mxu0 %v461
        %465 = vmatprep.subr.bf16.mxu0 0
        %466 = vmatpush1.bf16.msra.mxu0 0
        %467 = vmatprep.subr.bf16.mxu0 0
        %468 = vmatpush1.bf16.msra.mxu0 0
        %469 = vmatprep.subr.bf16.mxu0 0
        %470 = vmatpush1.bf16.msra.mxu0 0
        %471 = vmatprep.subr.bf16.mxu0 0
        %472 = vmatpush1.bf16.msra.mxu0 0
        %473 = vmatprep.subr.bf16.mxu0 0
        %474 = vmatpush1.bf16.msra.mxu0 0
        %475 = vmatprep.subr.bf16.mxu0 0
        %476 = vmatpush1.bf16.msra.mxu0 0
        %477 = vmatprep.subr.bf16.mxu0 0
        %478 = vmatpush1.bf16.msra.mxu0 0
        %479 = vmatprep.subr.bf16.mxu0 0
        %480 = vmatpush1.bf16.msra.mxu0 0
        %481 = vmatprep.subr.bf16.mxu0 0
        %482 = vmatpush1.bf16.msra.mxu0 0
        %483 = vmatprep.subr.bf16.mxu0 0
        %484 = vmatpush1.bf16.msra.mxu0 0
        %485 = vmatprep.subr.bf16.mxu0 0
        %486 = vmatpush1.bf16.msra.mxu0 0
        %487 = vmatprep.subr.bf16.mxu0 0
        %488 = vmatpush1.bf16.msra.mxu0 0
        %489 = vmatprep.subr.bf16.mxu0 0
        %490 = vmatpush1.bf16.msra.mxu0 0
        %491 = vmatprep.subr.bf16.mxu0 0
        %492 = vmatpush1.bf16.msra.mxu0 0
        %493 = vmatprep.subr.bf16.mxu0 0
        %494 = vmatpush1.bf16.msra.mxu0 0
        %495 = vmatprep.mubr.bf16.mxu0 0
        %496 = vmatmul.mubr.bf16.gmra.mrb[0].mxu0 %v457
        %v497 = vpop.f32.mrb[0].mxu0
        %v498 = vadd.f32 0.0, %v497
        %v499 = vpop.f32.mrb[0].mxu0
        %v500 = vpop.f32.mrb[0].mxu0
        %v501 = vpop.f32.mrb[0].mxu0
        %502 = vdwg.mxu0
        %v503 = vpack.c.bf16 %v498, %v498
        %v504 = vld [vmem:[#allocation10] sm:$0xff]
        %v505 = vld [vmem:[#allocation10 + $0x8] sm:$0xf]
        %v506 = vld [vmem:[#allocation10 + $0xc] sm:$0xff]
        %v507 = vld [vmem:[#allocation10 + $0x14] sm:$0xf]
        %v508 = vld [vmem:[#allocation10 + $0x18] sm:$0xff]
        %v509 = vld [vmem:[#allocation10 + $0x20] sm:$0xf]
        %v510 = vld [vmem:[#allocation10 + $0x24] sm:$0xff]
        %v511 = vld [vmem:[#allocation10 + $0x2c] sm:$0xf]
        %v512 = vld [vmem:[#allocation10 + $0x30] sm:$0xff]
        %v513 = vld [vmem:[#allocation10 + $0x38] sm:$0xf]
        %v514 = vld [vmem:[#allocation10 + $0x3c] sm:$0xff]
        %v515 = vld [vmem:[#allocation10 + $0x44] sm:$0xf]
        %v516 = vld [vmem:[#allocation10 + $0x48] sm:$0xff]
        %v517 = vld [vmem:[#allocation10 + $0x50] sm:$0xf]
        %v518 = vld [vmem:[#allocation10 + $0x54] sm:$0xff]
        %v519 = vld [vmem:[#allocation10 + $0x5c] sm:$0xf]
        %v520 = vld [vmem:[#allocation10 + $0x60] sm:$0xff]
        %v521 = vld [vmem:[#allocation10 + $0x68] sm:$0xf]
        %v522 = vld [vmem:[#allocation10 + $0x6c] sm:$0xff]
        %v523 = vld [vmem:[#allocation10 + $0x74] sm:$0xf]
        %v524 = vld [vmem:[#allocation10 + $0x78] sm:$0xff]
        %v525 = vld [vmem:[#allocation10 + $0x80] sm:$0xf]
        %v526 = vld [vmem:[#allocation10 + $0x84] sm:$0xff]
        %v527 = vld [vmem:[#allocation10 + $0x8c] sm:$0xf]
        %v528 = vld [vmem:[#allocation10 + $0x90] sm:$0xff]
        %v529 = vld [vmem:[#allocation10 + $0x98] sm:$0xf]
        %v530 = vld [vmem:[#allocation10 + $0x9c] sm:$0xff]
        %v531 = vld [vmem:[#allocation10 + $0xa4] sm:$0xf]
        %v532 = vld [vmem:[#allocation10 + $0xa8] sm:$0xff]
        %v533 = vld [vmem:[#allocation10 + $0xb0] sm:$0xf]
        %v534 = vld [vmem:[#allocation10 + $0xb4] sm:$0xff]
        %v535 = vld [vmem:[#allocation10 + $0xbc] sm:$0xf]
        %v536 = vld [vmem:[%s6] sm:$0x7]
        %v538 = vlaneseq
        %v539 = vshrl.u32 %v538, 7
        %v540 = vsub.s32 0, %v539
        %v541 = vrot.slane %v536, %v540
        %v542 = vlaneseq
        %v543 = vshrl.u32 %v542, 7
        %v544 = vsub.s32 1, %v543
        %v545 = vrot.slane %v536, %v544
        %v546 = vlaneseq
        %v547 = vshrl.u32 %v546, 7
        %v548 = vsub.s32 2, %v547
        %v549 = vrot.slane %v536, %v548
        %v585 = vunpack.c.l.b16 %v504
        %v586 = vunpack.c.h.b16 %v504
        %v587 = vunpack.c.l.b16 %v505
        %v588 = vunpack.c.l.b16 %v506
        %v589 = vunpack.c.h.b16 %v506
        %v590 = vunpack.c.l.b16 %v507
        %v591 = vunpack.c.l.b16 %v508
        %v592 = vunpack.c.h.b16 %v508
        %v593 = vunpack.c.l.b16 %v509
        %v594 = vunpack.c.l.b16 %v510
        %v595 = vunpack.c.h.b16 %v510
        %v596 = vunpack.c.l.b16 %v511
        %v597 = vunpack.c.l.b16 %v512
        %v598 = vunpack.c.h.b16 %v512
        %v599 = vunpack.c.l.b16 %v513
        %v600 = vunpack.c.l.b16 %v514
        %v601 = vunpack.c.h.b16 %v514
        %v602 = vunpack.c.l.b16 %v515
        %v603 = vunpack.c.l.b16 %v516
        %v604 = vunpack.c.h.b16 %v516
        %v605 = vunpack.c.l.b16 %v517
        %v606 = vunpack.c.l.b16 %v518
        %v607 = vunpack.c.h.b16 %v518
        %v608 = vunpack.c.l.b16 %v519
        %v609 = vunpack.c.l.b16 %v520
        %v610 = vunpack.c.h.b16 %v520
        %v611 = vunpack.c.l.b16 %v521
        %v612 = vunpack.c.l.b16 %v522
        %v613 = vunpack.c.h.b16 %v522
        %v614 = vunpack.c.l.b16 %v523
        %v615 = vunpack.c.l.b16 %v524
        %v616 = vunpack.c.h.b16 %v524
        %v617 = vunpack.c.l.b16 %v525
        %v618 = vunpack.c.l.b16 %v526
        %v619 = vunpack.c.h.b16 %v526
        %v620 = vunpack.c.l.b16 %v527
        %v621 = vunpack.c.l.b16 %v528
        %v622 = vunpack.c.h.b16 %v528
        %v623 = vunpack.c.l.b16 %v529
        %v624 = vunpack.c.l.b16 %v530
        %v625 = vunpack.c.h.b16 %v530
        %v626 = vunpack.c.l.b16 %v531
        %v627 = vunpack.c.l.b16 %v532
        %v628 = vunpack.c.h.b16 %v532
        %v629 = vunpack.c.l.b16 %v533
        %v630 = vunpack.c.l.b16 %v534
        %v631 = vunpack.c.h.b16 %v534
        %v632 = vunpack.c.l.b16 %v535
        %v633 = vpack.c.b16 %v588, %v585
        %v634 = vpack.c.b16 %v589, %v586
        %v635 = vpack.c.b16 %v590, %v587
        %v636 = vpack.c.b16 %v594, %v591
        %v637 = vpack.c.b16 %v595, %v592
        %v638 = vpack.c.b16 %v596, %v593
        %v639 = vpack.c.b16 %v600, %v597
        %v640 = vpack.c.b16 %v601, %v598
        %v641 = vpack.c.b16 %v602, %v599
        %v642 = vpack.c.b16 %v606, %v603
        %v643 = vpack.c.b16 %v607, %v604
        %v644 = vpack.c.b16 %v608, %v605
        %v645 = vpack.c.b16 %v612, %v609
        %v646 = vpack.c.b16 %v613, %v610
        %v647 = vpack.c.b16 %v614, %v611
        %v648 = vpack.c.b16 %v618, %v615
        %v649 = vpack.c.b16 %v619, %v616
        %v650 = vpack.c.b16 %v620, %v617
        %v651 = vpack.c.b16 %v624, %v621
        %v652 = vpack.c.b16 %v625, %v622
        %v653 = vpack.c.b16 %v626, %v623
        %v654 = vpack.c.b16 %v630, %v627
        %v655 = vpack.c.b16 %v631, %v628
        %v656 = vpack.c.b16 %v632, %v629
        %681 = vmatprep.subr.bf16.mxu0 %v634
        %682 = vmatpush1.bf16.msra.mxu0 %v633
        %683 = vmatprep.subr.bf16.mxu0 %v637
        %684 = vmatpush1.bf16.msra.mxu0 %v636
        %685 = vmatprep.subr.bf16.mxu0 %v640
        %686 = vmatpush1.bf16.msra.mxu0 %v639
        %687 = vmatprep.subr.bf16.mxu0 %v643
        %688 = vmatpush1.bf16.msra.mxu0 %v642
        %689 = vmatprep.subr.bf16.mxu0 %v646
        %690 = vmatpush1.bf16.msra.mxu0 %v645
        %691 = vmatprep.subr.bf16.mxu0 %v649
        %692 = vmatpush1.bf16.msra.mxu0 %v648
        %693 = vmatprep.subr.bf16.mxu0 %v652
        %694 = vmatpush1.bf16.msra.mxu0 %v651
        %695 = vmatprep.subr.bf16.mxu0 %v655
        %696 = vmatpush1.bf16.msra.mxu0 %v654
        %697 = vmatprep.subr.bf16.mxu0 0
        %698 = vmatpush1.bf16.msra.mxu0 0
        %699 = vmatprep.subr.bf16.mxu0 0
        %700 = vmatpush1.bf16.msra.mxu0 0
        %701 = vmatprep.subr.bf16.mxu0 0
        %702 = vmatpush1.bf16.msra.mxu0 0
        %703 = vmatprep.subr.bf16.mxu0 0
        %704 = vmatpush1.bf16.msra.mxu0 0
        %705 = vmatprep.subr.bf16.mxu0 0
        %706 = vmatpush1.bf16.msra.mxu0 0
        %707 = vmatprep.subr.bf16.mxu0 0
        %708 = vmatpush1.bf16.msra.mxu0 0
        %709 = vmatprep.subr.bf16.mxu0 0
        %710 = vmatpush1.bf16.msra.mxu0 0
        %711 = vmatprep.subr.bf16.mxu0 0
        %712 = vmatpush1.bf16.msra.mxu0 0
        %713 = vmatprep.mubr.bf16.mxu0 0
        %714 = vmatmul.mubr.bf16.gmra.mrb[0].mxu0 %v503
        %v715 = vpop.f32.mrb[0].mxu0
        %v716 = vadd.f32 %v541, %v715
        %v717 = vpop.f32.mrb[0].mxu0
        %v718 = vadd.f32 %v545, %v717
        %v719 = vpop.f32.mrb[0].mxu0
        %v720 = vpop.f32.mrb[0].mxu0
        %721 = vdwg.mxu0
        %722 = vmatprep.subr.bf16.mxu0 0
        %723 = vmatpush1.bf16.msra.mxu0 %v635
        %724 = vmatprep.subr.bf16.mxu0 0
        %725 = vmatpush1.bf16.msra.mxu0 %v638
        %726 = vmatprep.subr.bf16.mxu0 0
        %727 = vmatpush1.bf16.msra.mxu0 %v641
        %728 = vmatprep.subr.bf16.mxu0 0
        %729 = vmatpush1.bf16.msra.mxu0 %v644
        %730 = vmatprep.subr.bf16.mxu0 0
        %731 = vmatpush1.bf16.msra.mxu0 %v647
        %732 = vmatprep.subr.bf16.mxu0 0
        %733 = vmatpush1.bf16.msra.mxu0 %v650
        %734 = vmatprep.subr.bf16.mxu0 0
        %735 = vmatpush1.bf16.msra.mxu0 %v653
        %736 = vmatprep.subr.bf16.mxu0 0
        %737 = vmatpush1.bf16.msra.mxu0 %v656
        %738 = vmatprep.subr.bf16.mxu0 0
        %739 = vmatpush1.bf16.msra.mxu0 0
        %740 = vmatprep.subr.bf16.mxu0 0
        %741 = vmatpush1.bf16.msra.mxu0 0
        %742 = vmatprep.subr.bf16.mxu0 0
        %743 = vmatpush1.bf16.msra.mxu0 0
        %744 = vmatprep.subr.bf16.mxu0 0
        %745 = vmatpush1.bf16.msra.mxu0 0
        %746 = vmatprep.subr.bf16.mxu0 0
        %747 = vmatpush1.bf16.msra.mxu0 0
        %748 = vmatprep.subr.bf16.mxu0 0
        %749 = vmatpush1.bf16.msra.mxu0 0
        %750 = vmatprep.subr.bf16.mxu0 0
        %751 = vmatpush1.bf16.msra.mxu0 0
        %752 = vmatprep.subr.bf16.mxu0 0
        %753 = vmatpush1.bf16.msra.mxu0 0
        %754 = vmatprep.mubr.bf16.mxu0 0
        %755 = vmatmul.mubr.bf16.gmra.mrb[0].mxu0 %v503
        %v756 = vpop.f32.mrb[0].mxu0
        %v757 = vadd.f32 %v549, %v756
        %v758 = vpop.f32.mrb[0].mxu0
        %v759 = vpop.f32.mrb[0].mxu0
        %v760 = vpop.f32.mrb[0].mxu0
        %761 = vdwg.mxu0
        %v762 = vld [vmem:[#allocation11] sm:$0xff]
        %v763 = vld [vmem:[#allocation11 + $0x8] sm:$0xff]
        %v764 = vld [vmem:[#allocation11 + $0x10] sm:$0xff]
        %v765 = vld [vmem:[#allocation11 + $0x18] sm:$0xff]
        %v766 = vld [vmem:[#allocation11 + $0x20] sm:$0xff]
        %v767 = vld [vmem:[#allocation11 + $0x28] sm:$0xff]
        %v768 = vld [vmem:[#allocation11 + $0x30] sm:$0xff]
        %v769 = vld [vmem:[#allocation11 + $0x38] sm:$0xff]
        %v770 = vld [vmem:[#allocation11 + $0x40] sm:$0xff]
        %v771 = vld [vmem:[#allocation11 + $0x48] sm:$0xff]
        %v772 = vld [vmem:[#allocation11 + $0x50] sm:$0xff]
        %v773 = vld [vmem:[#allocation11 + $0x58] sm:$0xff]
        %v774 = vld [vmem:[#allocation11 + $0x60] sm:$0xff]
        %v775 = vld [vmem:[#allocation11 + $0x68] sm:$0xff]
        %v776 = vld [vmem:[#allocation11 + $0x70] sm:$0xff]
        %v777 = vld [vmem:[#allocation11 + $0x78] sm:$0xff]
        %v794 = vunpack.c.l.b16 %v762
        %v795 = vunpack.c.h.b16 %v762
        %v796 = vunpack.c.l.b16 %v763
        %v797 = vunpack.c.h.b16 %v763
        %v798 = vunpack.c.l.b16 %v764
        %v799 = vunpack.c.h.b16 %v764
        %v800 = vunpack.c.l.b16 %v765
        %v801 = vunpack.c.h.b16 %v765
        %v802 = vunpack.c.l.b16 %v766
        %v803 = vunpack.c.h.b16 %v766
        %v804 = vunpack.c.l.b16 %v767
        %v805 = vunpack.c.h.b16 %v767
        %v806 = vunpack.c.l.b16 %v768
        %v807 = vunpack.c.h.b16 %v768
        %v808 = vunpack.c.l.b16 %v769
        %v809 = vunpack.c.h.b16 %v769
        %v810 = vunpack.c.l.b16 %v770
        %v811 = vunpack.c.h.b16 %v770
        %v812 = vunpack.c.l.b16 %v771
        %v813 = vunpack.c.h.b16 %v771
        %v814 = vunpack.c.l.b16 %v772
        %v815 = vunpack.c.h.b16 %v772
        %v816 = vunpack.c.l.b16 %v773
        %v817 = vunpack.c.h.b16 %v773
        %v818 = vunpack.c.l.b16 %v774
        %v819 = vunpack.c.h.b16 %v774
        %v820 = vunpack.c.l.b16 %v775
        %v821 = vunpack.c.h.b16 %v775
        %v822 = vunpack.c.l.b16 %v776
        %v823 = vunpack.c.h.b16 %v776
        %v824 = vunpack.c.l.b16 %v777
        %v825 = vunpack.c.h.b16 %v777
        %v826 = vpack.c.b16 %v796, %v794
        %v827 = vpack.c.b16 %v797, %v795
        %v828 = vpack.c.b16 %v800, %v798
        %v829 = vpack.c.b16 %v801, %v799
        %v830 = vpack.c.b16 %v804, %v802
        %v831 = vpack.c.b16 %v805, %v803
        %v832 = vpack.c.b16 %v808, %v806
        %v833 = vpack.c.b16 %v809, %v807
        %v834 = vpack.c.b16 %v812, %v810
        %v835 = vpack.c.b16 %v813, %v811
        %v836 = vpack.c.b16 %v816, %v814
        %v837 = vpack.c.b16 %v817, %v815
        %v838 = vpack.c.b16 %v820, %v818
        %v839 = vpack.c.b16 %v821, %v819
        %v840 = vpack.c.b16 %v824, %v822
        %v841 = vpack.c.b16 %v825, %v823
        %858 = vmatprep.subr.bf16.mxu0 %v827
        %859 = vmatpush1.bf16.msra.mxu0 %v826
        %860 = vmatprep.subr.bf16.mxu0 %v829
        %861 = vmatpush1.bf16.msra.mxu0 %v828
        %862 = vmatprep.subr.bf16.mxu0 %v831
        %863 = vmatpush1.bf16.msra.mxu0 %v830
        %864 = vmatprep.subr.bf16.mxu0 %v833
        %865 = vmatpush1.bf16.msra.mxu0 %v832
        %866 = vmatprep.subr.bf16.mxu0 %v835
        %867 = vmatpush1.bf16.msra.mxu0 %v834
        %868 = vmatprep.subr.bf16.mxu0 %v837
        %869 = vmatpush1.bf16.msra.mxu0 %v836
        %870 = vmatprep.subr.bf16.mxu0 %v839
        %871 = vmatpush1.bf16.msra.mxu0 %v838
        %872 = vmatprep.subr.bf16.mxu0 %v841
        %873 = vmatpush1.bf16.msra.mxu0 %v840
        %874 = vmatprep.subr.bf16.mxu0 0
        %875 = vmatpush1.bf16.msra.mxu0 0
        %876 = vmatprep.subr.bf16.mxu0 0
        %877 = vmatpush1.bf16.msra.mxu0 0
        %878 = vmatprep.subr.bf16.mxu0 0
        %879 = vmatpush1.bf16.msra.mxu0 0
        %880 = vmatprep.subr.bf16.mxu0 0
        %881 = vmatpush1.bf16.msra.mxu0 0
        %882 = vmatprep.subr.bf16.mxu0 0
        %883 = vmatpush1.bf16.msra.mxu0 0
        %884 = vmatprep.subr.bf16.mxu0 0
        %885 = vmatpush1.bf16.msra.mxu0 0
        %886 = vmatprep.subr.bf16.mxu0 0
        %887 = vmatpush1.bf16.msra.mxu0 0
        %888 = vmatprep.subr.bf16.mxu0 0
        %889 = vmatpush1.bf16.msra.mxu0 0
        %890 = vmatprep.mubr.bf16.mxu0 0
        %891 = vmatmul.mubr.bf16.gmra.mrb[0].mxu0 %v454
        %v892 = vpop.f32.mrb[0].mxu0
        %v893 = vadd.f32 0.0, %v892
        %v894 = vpop.f32.mrb[0].mxu0
        %v895 = vadd.f32 0.0, %v894
        %v896 = vpop.f32.mrb[0].mxu0
        %v897 = vpop.f32.mrb[0].mxu0
        %898 = vdwg.mxu0
        %v899 = vadd.f32 %v716, %v893
        %v900 = vxor.u32 %v899, 2147483648
        %v901 = vmul.f32 %v900, 1.442695
        %v902 = vpow.pop %v901
        %v903 = vadd.f32 %v902, 1.0
        %v904 = vrcp.pop %v903
        %v905 = vmul.f32 1.0, %v904
        %v906 = vadd.f32 %v718, %v895
        %v907 = vxor.u32 %v906, 2147483648
        %v908 = vmul.f32 %v907, 1.442695
        %v909 = vpow.pop %v908
        %v910 = vadd.f32 %v909, 1.0
        %v911 = vrcp.pop %v910
        %v912 = vmul.f32 1.0, %v911
        %v913 = vmul.f32 %v385, %v912
        %v914 = vpack.c.bf16 %v913, %v913
        %v915 = vld [vmem:[#allocation13] sm:$0xf]
        %v916 = vld [vmem:[#allocation13 + $0x4] sm:$0xf]
        %v917 = vld [vmem:[#allocation13 + $0x8] sm:$0xf]
        %v918 = vld [vmem:[#allocation13 + $0xc] sm:$0xf]
        %v919 = vld [vmem:[#allocation13 + $0x10] sm:$0xf]
        %v920 = vld [vmem:[#allocation13 + $0x14] sm:$0xf]
        %v921 = vld [vmem:[#allocation13 + $0x18] sm:$0xf]
        %v922 = vld [vmem:[#allocation13 + $0x1c] sm:$0xf]
        %v923 = vld [vmem:[#allocation13 + $0x20] sm:$0xf]
        %v924 = vld [vmem:[#allocation13 + $0x24] sm:$0xf]
        %v925 = vld [vmem:[#allocation13 + $0x28] sm:$0xf]
        %v926 = vld [vmem:[#allocation13 + $0x2c] sm:$0xf]
        %v927 = vld [vmem:[#allocation13 + $0x30] sm:$0xf]
        %v928 = vld [vmem:[#allocation13 + $0x34] sm:$0xf]
        %v929 = vld [vmem:[#allocation13 + $0x38] sm:$0xf]
        %v930 = vld [vmem:[#allocation13 + $0x3c] sm:$0xf]
        %v947 = vunpack.c.l.b16 %v915
        %v948 = vunpack.c.l.b16 %v916
        %v949 = vunpack.c.l.b16 %v917
        %v950 = vunpack.c.l.b16 %v918
        %v951 = vunpack.c.l.b16 %v919
        %v952 = vunpack.c.l.b16 %v920
        %v953 = vunpack.c.l.b16 %v921
        %v954 = vunpack.c.l.b16 %v922
        %v955 = vunpack.c.l.b16 %v923
        %v956 = vunpack.c.l.b16 %v924
        %v957 = vunpack.c.l.b16 %v925
        %v958 = vunpack.c.l.b16 %v926
        %v959 = vunpack.c.l.b16 %v927
        %v960 = vunpack.c.l.b16 %v928
        %v961 = vunpack.c.l.b16 %v929
        %v962 = vunpack.c.l.b16 %v930
        %v963 = vpack.c.b16 %v948, %v947
        %v964 = vpack.c.b16 %v950, %v949
        %v965 = vpack.c.b16 %v952, %v951
        %v966 = vpack.c.b16 %v954, %v953
        %v967 = vpack.c.b16 %v956, %v955
        %v968 = vpack.c.b16 %v958, %v957
        %v969 = vpack.c.b16 %v960, %v959
        %v970 = vpack.c.b16 %v962, %v961
        %979 = vmatprep.subr.bf16.mxu0 0
        %980 = vmatpush1.bf16.msra.mxu0 %v963
        %981 = vmatprep.subr.bf16.mxu0 0
        %982 = vmatpush1.bf16.msra.mxu0 %v964
        %983 = vmatprep.subr.bf16.mxu0 0
        %984 = vmatpush1.bf16.msra.mxu0 %v965
        %985 = vmatprep.subr.bf16.mxu0 0
        %986 = vmatpush1.bf16.msra.mxu0 %v966
        %987 = vmatprep.subr.bf16.mxu0 0
        %988 = vmatpush1.bf16.msra.mxu0 %v967
        %989 = vmatprep.subr.bf16.mxu0 0
        %990 = vmatpush1.bf16.msra.mxu0 %v968
        %991 = vmatprep.subr.bf16.mxu0 0
        %992 = vmatpush1.bf16.msra.mxu0 %v969
        %993 = vmatprep.subr.bf16.mxu0 0
        %994 = vmatpush1.bf16.msra.mxu0 %v970
        %995 = vmatprep.subr.bf16.mxu0 0
        %996 = vmatpush1.bf16.msra.mxu0 0
        %997 = vmatprep.subr.bf16.mxu0 0
        %998 = vmatpush1.bf16.msra.mxu0 0
        %999 = vmatprep.subr.bf16.mxu0 0
        %1000 = vmatpush1.bf16.msra.mxu0 0
        %1001 = vmatprep.subr.bf16.mxu0 0
        %1002 = vmatpush1.bf16.msra.mxu0 0
        %1003 = vmatprep.subr.bf16.mxu0 0
        %1004 = vmatpush1.bf16.msra.mxu0 0
        %1005 = vmatprep.subr.bf16.mxu0 0
        %1006 = vmatpush1.bf16.msra.mxu0 0
        %1007 = vmatprep.subr.bf16.mxu0 0
        %1008 = vmatpush1.bf16.msra.mxu0 0
        %1009 = vmatprep.subr.bf16.mxu0 0
        %1010 = vmatpush1.bf16.msra.mxu0 0
        %1011 = vmatprep.mubr.bf16.mxu0 0
        %1012 = vmatmul.mubr.bf16.gmra.mrb[0].mxu0 %v914
        %v1013 = vpop.f32.mrb[0].mxu0
        %v1014 = vadd.f32 0.0, %v1013
        %v1015 = vpop.f32.mrb[0].mxu0
        %v1016 = vpop.f32.mrb[0].mxu0
        %v1017 = vpop.f32.mrb[0].mxu0
        %1018 = vdwg.mxu0
        %v1019 = vadd.f32 %v757, %v1014
        %v1020 = vtanh.pop %v1019
        %v1021 = vsub.f32 1.0, %v905
        %v1022 = vmul.f32 %v385, %v1021
        %v1023 = vmul.f32 %v1020, %v905
        %v1024 = vadd.f32 %v1022, %v1023
        %1025 = vst [vmem:[#allocation2] sm:$0xff] %v1024
        %p1026 = scmp.eq.s32.totalorder %s40, 1
        // Predicated region
        $region69: #{tpu_custom_call.1} parent=43 // pred_check
          %p1027 = pneg %p1026
        $region70: #{tpu_custom_call.1} parent=43 // pred_check_branch
          %1029 = sbr.rel (%p1027) target = $region72
        $region71: #{tpu_custom_call.1} parent=43 // pred_region
          %1030 = vst [vmem:[%s370] sm:$0xff] %v1024
          %v1031 = vsel %vm439, %v1024, 0.0
          %v1032 = vrot.slane %v1031, 4
          %v1033 = vadd.f32 %v1031, %v1032
          %v1034 = vrot.slane %v1033, 2
          %v1035 = vadd.f32 %v1033, %v1034
          %v1036 = vrot.slane %v1035, 1
          %v1037 = vadd.f32 %v1035, %v1036
          %s1038 = scvt.s32.f32 %s378
          %v1039 = vstv %s1038
          %v1040 = vrcp.pop %v1039
          %v1041 = vmul.f32 %v1037, %v1040
          %1042 = vst [vmem:[%s376] sm:$0x1] %v1041
        $region72: #{tpu_custom_call.1} parent=43 // pred_fallthru
          _
        %s1043 = sand.u32 %s186, 1
        %s1044 = scalar_lea.sflag [#allocation7], %s1043
        %s1045 = sand.u32 %s186, 1
        %s1046 = smul.addr %s1045, 8
        %s1047 = scalar_lea.vmem [#allocation14], %s1046
        %s1048 = sand.u32 %s212, 1
        %s1049 = scalar_lea.sflag [#allocation16], %s1048
        %s1050 = sand.u32 %s212, 1
        %s1051 = scalar_lea.vmem [#allocation15], %s1050
        // Predicated region
        $region73: #{tpu_custom_call.1} parent=43 // pred_check
          %p1052 = pneg %p196
        $region74: #{tpu_custom_call.1} parent=43 // pred_check_branch
          %1054 = sbr.rel (%p1052) target = $region76
        $region75: #{tpu_custom_call.1} parent=43 // pred_region
          %s1056 = ssub.s32 128, 128
          %1057 = vsyncadd %s1044, %s1056
          %s1058 = smul.addr %s39, 128
          %s1059 = scalar_lea.hbm %s7, %s1058
          %s1061 = sshll.u32 %s1047, 4
          %s1062 = int_to_ptr.vmem [resolvable:$true] %s1061
          %1064 = dma.vmem_to_hbm [thread:$0]  %s1062, 128, %s1059, %s1044
        $region76: #{tpu_custom_call.1} parent=43 // pred_fallthru
          _
        // Predicated region
        $region77: #{tpu_custom_call.1} parent=43 // pred_check
          %p1065 = pneg %p222
        $region78: #{tpu_custom_call.1} parent=43 // pred_check_branch
          %1067 = sbr.rel (%p1065) target = $region80
        $region79: #{tpu_custom_call.1} parent=43 // pred_region
          %s1069 = ssub.s32 16, 16
          %1070 = vsyncadd %s1049, %s1069
          %s1071 = smul.addr %s39, 16
          %s1072 = scalar_lea.hbm %s8, %s1071
          %s1074 = sshll.u32 %s1051, 4
          %s1075 = int_to_ptr.vmem [resolvable:$true] %s1074
          %1077 = dma.vmem_to_hbm [thread:$0]  %s1075, 16, %s1072, %s1049
        $region80: #{tpu_custom_call.1} parent=43 // pred_fallthru
          _
      $region44: #{tpu_custom_call.1} parent=5 // pred_fallthru
        _
      %p1078 = scmp.le.s32.totalorder 2, %s30
      // Predicated region
      $region81: #{tpu_custom_call.1} parent=5 // pred_check
        %p1079 = pneg %p1078
      $region82: #{tpu_custom_call.1} parent=5 // pred_check_branch
        %1081 = sbr.rel (%p1079) target = $region84
      $region83: #{tpu_custom_call.1} parent=5 // pred_region
        %s1082 = ssub.s32 %s30, 2
        // Predicated region
        $region85: #{tpu_custom_call.1} parent=83 // pred_check
          %p1083 = pneg %p202
        $region86: #{tpu_custom_call.1} parent=83 // pred_check_branch
          %1085 = sbr.rel (%p1083) target = $region88
        $region87: #{tpu_custom_call.1} parent=83 // pred_region
          %s1086 = sand.u32 %s187, 1
          %s1087 = scalar_lea.sflag [#allocation7], %s1086
          %s1088 = sand.u32 %s187, 1
          %s1089 = smul.addr %s1088, 8
          %s1090 = scalar_lea.vmem [#allocation14], %s1089
          %1091 = dma.done %s1087, 128
        $region88: #{tpu_custom_call.1} parent=83 // pred_fallthru
          _
        // Predicated region
        $region89: #{tpu_custom_call.1} parent=83 // pred_check
          %p1092 = pneg %p228
        $region90: #{tpu_custom_call.1} parent=83 // pred_check_branch
          %1094 = sbr.rel (%p1092) target = $region92
        $region91: #{tpu_custom_call.1} parent=83 // pred_region
          %s1095 = sand.u32 %s213, 1
          %s1096 = scalar_lea.sflag [#allocation16], %s1095
          %s1097 = sand.u32 %s213, 1
          %s1098 = scalar_lea.vmem [#allocation15], %s1097
          %1099 = dma.done %s1096, 16
        $region92: #{tpu_custom_call.1} parent=83 // pred_fallthru
          _
      $region84: #{tpu_custom_call.1} parent=5 // pred_fallthru
        _
    $region6: #{tpu_custom_call.1} parent=1 // loop_footer
      %s34 = sadd.s32 1, %s30
    $region7: #{tpu_custom_call.1} parent=1 // loop_footer_branch
      %29 = sbr.rel target = $region3
    $region8: #{tpu_custom_call.1} parent=1 // loop_exit
      _
    %1100 = vsyncpa [#allocation6], 1
    %s1101 = scalar_lea.sflag [#allocation6], 1
    %1102 = vsyncpa %s1101, 1
    %1103 = vsyncpa [#allocation9], 1
    %1104 = vsyncpa [#allocation12], 1
    %1105 = vsyncpa [#allocation7], 1
    %s1106 = scalar_lea.sflag [#allocation7], 1
    %1107 = vsyncpa %s1106, 1
    %1108 = vsyncpa [#allocation16], 1
    %s1109 = scalar_lea.sflag [#allocation16], 1
    %1110 = vsyncpa %s1109, 1

</llo_original>
